<compile_context>
chip_gen: v6e
topology: v6e:2x2x1
jax: 0.10.0
libtpu: 0.0.40
codegen_flags: <defaults>
</compile_context>

<pallas_src>
import jax
import jax.numpy as jnp
from jax.experimental import pallas as pl
from jax.experimental.pallas import tpu as pltpu


def _resu_kernel(x_ref, o_ref):
    # 0.5 * max(x, 0)**2 — one vmax + two vmuls per vreg: free filler under the
    # HBM stream, no VALU tuning needed (no need to hoist the 0.5).
    x = x_ref[...]
    r = jnp.maximum(x, jnp.zeros_like(x))
    o_ref[...] = (0.5 * r * r).astype(o_ref.dtype)


_LANE = 128
# Minimum sublane packing per element size (f32: 8, bf16: 16, int8/fp8: 32).
_MIN_SUBLANES = {4: 8, 2: 16, 1: 32}
_KERNEL_DTYPES = (jnp.dtype(jnp.float32), jnp.dtype(jnp.bfloat16))


def _chip_profile():
    """(target_block_bytes, num_tensorcores) for the default TPU backend."""
    try:
        kind = jax.devices()[0].device_kind.lower()
    except Exception:
        return 2 * 1024 * 1024, 1
    if "v7" in kind:
        # ~3.2 TB/s HBM: 2 MiB blocks leave the ~0.35 us/step overhead at
        # 20-25% of each step; 4 MiB blocks (4x = 16 MiB working set, under the
        # 32 MiB scoped default / 64 MiB physical) return to the roofline. 2 TCs.
        return 4 * 1024 * 1024, 2
    if "v6" in kind:
        # 32 MiB scoped default: 4 MiB blocks are safe (small win vs 2 MiB).
        return 4 * 1024 * 1024, 1
    if "v5p" in kind or "v4" in kind:
        # Megacore chips: 2 TensorCores; keep the modest block size.
        return 2 * 1024 * 1024, 2
    # v5e and older: 16 MiB scoped default -> keep ~2 MiB blocks
    # (~5 us DMA/step at 0.82 TB/s, overhead already <7%).
    return 2 * 1024 * 1024, 1


def _resu_jnp(x):
    """Plain-XLA ReSU with PyTorch-style promotion for non-float dtypes."""
    if jnp.issubdtype(x.dtype, jnp.floating):
        r = jnp.maximum(x, jnp.zeros_like(x))
        return (0.5 * r * r).astype(x.dtype)
    # Integer / bool inputs: PyTorch's `0.5 * clamp_min(x, 0) ** 2` promotes to float.
    r = jnp.maximum(x, 0).astype(jnp.float32)
    return 0.5 * r * r


def _resu_pallas_2d(x2d, *, block_bytes, num_tc, donate):
    rows, width = x2d.shape
    dtype = x2d.dtype
    itemsize = jnp.dtype(dtype).itemsize
    min_sub = _MIN_SUBLANES.get(itemsize, 8)

    # Row tile sized for ~block_bytes, sublane aligned; ragged last block is
    # masked by Pallas via the cdiv grid (no degenerate shrink loop).
    tr_target = max(min_sub, block_bytes // (width * itemsize))
    if rows <= tr_target:
        tr = rows  # single block == full array dims (always legal)
    else:
        tr = max(min_sub, (tr_target // min_sub) * min_sub)

    # Multi-TensorCore chips (v7x/v5p/v4): cap the tile so the grid has at
    # least num_tc steps and dimension_semantics=("parallel",) can shard it.
    if num_tc > 1 and rows >= num_tc * min_sub:
        per_core = max(min_sub, (pl.cdiv(rows, num_tc) // min_sub) * min_sub)
        tr = min(tr, per_core)

    grid = (pl.cdiv(rows, tr),)

    # Explicit VMEM budget: double-buffered in+out = 4 x block, 1.5x headroom.
    block_actual = tr * width * itemsize
    vmem_limit = int(max(4 * 1024 * 1024, 6 * block_actual + 2 * 1024 * 1024))

    n_elems = rows * width
    cost = pl.CostEstimate(
        flops=2 * n_elems,                   # max + square (0.5-mul is filler)
        transcendentals=0,
        bytes_accessed=2 * n_elems * itemsize,
    )

    # TODO(synk): sweep pipeline_mode=pl.Buffered(3) on in/out specs (expected
    # 1-3%, mostly on v7x); keep only if measured on hardware.
    return pl.pallas_call(
        _resu_kernel,
        out_shape=jax.ShapeDtypeStruct((rows, width), dtype),
        grid_spec=pltpu.PrefetchScalarGridSpec(
            num_scalar_prefetch=0,
            grid=grid,
            in_specs=[pl.BlockSpec((tr, width), lambda i: (i, 0))],
            out_specs=pl.BlockSpec((tr, width), lambda i: (i, 0)),
        ),
        compiler_params=pltpu.CompilerParams(
            dimension_semantics=("parallel",),
            vmem_limit_bytes=vmem_limit,
        ),
        cost_estimate=cost,
        input_output_aliases=({0: 0} if donate else {}),
    )(x2d)


def resu(x, *, block_bytes=None, donate=False):
    """Elementwise ReSU: 0.5 * max(x, 0)**2, same shape as input.

    donate=True aliases the kernel input buffer to its output
    (input_output_aliases={0: 0}) — use when x can be consumed destructively.
    """
    orig_shape = x.shape
    n = x.size
    if n == 0:
        return x
    if jnp.dtype(x.dtype) not in _KERNEL_DTYPES:
        # Integer / f64 / fp16 etc.: plain XLA (matches PyTorch float promotion).
        return _resu_jnp(x)

    profile_block, num_tc = _chip_profile()
    if block_bytes is None:
        block_bytes = profile_block

    x_flat = jnp.ravel(x)
    main = (n // _LANE) * _LANE
    tail = n - main

    if main == 0:
        # Less than one lane of data: a kernel launch cannot win.
        return _resu_jnp(x_flat).reshape(orig_shape)

    x_main = x_flat if tail == 0 else x_flat[:main]

    # Widest lane-dense last dim dividing the lane-aligned prefix: fewer grid
    # steps, longer DMA descriptors, unmasked vst.
    width = _LANE
    for w in (4096, 2048, 1024, 512, 256):
        if main % w == 0:
            width = w
            break
    rows = main // width

    out2d = _resu_pallas_2d(
        x_main.reshape(rows, width),
        block_bytes=block_bytes, num_tc=num_tc, donate=donate,
    )
    out_flat = out2d.reshape(-1)
    if tail:
        # <128-element remainder in plain jnp; one output-assembly concat is
        # the only extra pass on the (uncommon) ragged path.
        out_flat = jnp.concatenate([out_flat, _resu_jnp(x_flat[main:])])
    return out_flat.reshape(orig_shape)


if __name__ == "__main__":
    key = jax.random.PRNGKey(0)
    k1, k2, k3, k4 = jax.random.split(key, 4)

    def _ref(x):
        return 0.5 * jnp.maximum(x, jnp.zeros_like(x)) ** 2

    # 1) NCHW-style f32 activation (lane-aligned, zero-copy kernel path).
    x = jax.random.normal(k1, (2, 4, 16, 16), dtype=jnp.float32)
    y = jax.block_until_ready(resu(x))
    assert y.shape == x.shape and y.dtype == x.dtype
    assert jnp.allclose(y, _ref(x), atol=1e-6, rtol=1e-6)

    # 2) Ragged flat size with a lane-aligned prefix (150 = 128 + 22 tail).
    x_rag = jax.random.normal(k2, (5, 30), dtype=jnp.float32)
    y_rag = jax.block_until_ready(resu(x_rag))
    assert y_rag.shape == x_rag.shape
    assert jnp.allclose(y_rag, _ref(x_rag), atol=1e-6, rtol=1e-6)

    # 3) Tiny ragged size (<128 elems) -> pure-jnp path.
    x_tiny = jax.random.normal(k3, (3, 5, 7), dtype=jnp.float32)
    y_tiny = jax.block_until_ready(resu(x_tiny))
    assert jnp.allclose(y_tiny, _ref(x_tiny), atol=1e-6, rtol=1e-6)

    # 4) Multi-block grid with a masked partial last block (19 x 128, small
    #    block_bytes override forces grid=3 with a ragged tail block).
    x_tail = jax.random.normal(k4, (19, 128), dtype=jnp.float32)
    y_tail = jax.block_until_ready(resu(x_tail, block_bytes=4096))
    assert jnp.allclose(y_tail, _ref(x_tail), atol=1e-6, rtol=1e-6)

    # 5) bf16 activations (dtype-aware sublane handling).
    x_bf = jax.random.normal(k1, (2, 4, 16, 16), dtype=jnp.bfloat16)
    y_bf = jax.block_until_ready(resu(x_bf))
    assert y_bf.dtype == jnp.bfloat16
    assert jnp.allclose(y_bf.astype(jnp.float32),
                        _ref(x_bf).astype(jnp.float32), atol=1e-2, rtol=1e-2)

    # 6) Donated / aliased variant (input is an intermediate -> true in-place).
    donate_fn = jax.jit(lambda a: resu(a * 1.0, donate=True))
    y_don = jax.block_until_ready(donate_fn(x))
    assert jnp.allclose(y_don, _ref(x), atol=1e-6, rtol=1e-6)

    # 7) Integer input: matches PyTorch's float promotion (jnp fallback path).
    x_int = jnp.array([[-2, 0, 3]], dtype=jnp.int32)
    y_int = jax.block_until_ready(resu(x_int))
    assert jnp.issubdtype(y_int.dtype, jnp.floating)
    assert jnp.allclose(y_int, jnp.array([[0.0, 0.0, 4.5]]))

    print("KERNEL_OK")
</pallas_src>

<mosaic_0001>
module attributes {stable_mosaic.version = 11 : i64} {
  func.func @_resu_kernel(%arg0: i32, %arg1: memref<1x2048xf32, #tpu.memory_space<vmem>>, %arg2: memref<1x2048xf32, #tpu.memory_space<vmem>>) attributes {dimension_semantics = [#tpu.dimension_semantics<parallel>], iteration_bounds = array<i64: 1>, scalar_prefetch = 0 : i64, scratch_operands = 0 : i64, tpu.core_type = #tpu.core_type<tc>, window_params = [{transform_indices = @transform_0, window_bounds = array<i64: 1, 2048>}, {transform_indices = @transform_1, window_bounds = array<i64: 1, 2048>}]} {
    %c0 = arith.constant 0 : index
    %c0_0 = arith.constant 0 : index
    %0 = vector.load %arg1[%c0, %c0_0] : memref<1x2048xf32, #tpu.memory_space<vmem>>, vector<1x2048xf32>
    %cst = arith.constant 0.000000e+00 : f32
    %1 = vector.broadcast %cst : f32 to vector<1x2048xf32>
    %2 = arith.maximumf %0, %1 : vector<1x2048xf32>
    %cst_1 = arith.constant 5.000000e-01 : f32
    %3 = vector.broadcast %cst_1 : f32 to vector<1x2048xf32>
    %4 = arith.mulf %3, %2 : vector<1x2048xf32>
    %5 = arith.mulf %4, %2 : vector<1x2048xf32>
    %c0_2 = arith.constant 0 : index
    %c0_3 = arith.constant 0 : index
    %6 = vector.load %arg2[%c0_2, %c0_3] : memref<1x2048xf32, #tpu.memory_space<vmem>>, vector<1x2048xf32>
    tpu.vector_store %arg2[%c0_2, %c0_3], %5 {strides = array<i32>} : memref<1x2048xf32, #tpu.memory_space<vmem>>, vector<1x2048xf32>,
    return
  }
  func.func @transform_0(%arg0: i32) -> (i32, i32) {
    %c0_i32 = arith.constant 0 : i32
    %c0_i32_0 = arith.constant 0 : i32
    return %arg0, %c0_i32 : i32, i32
  }
  func.func @transform_1(%arg0: i32) -> (i32, i32) {
    %c0_i32 = arith.constant 0 : i32
    %c0_i32_0 = arith.constant 0 : i32
    return %arg0, %c0_i32 : i32, i32
  }
}

</mosaic_0001>

<llo_original>
// kernel: tpu_custom_call.1
$region0: #{tpu_custom_call.1}
  #allocation0 [shape = 'u32[]', space=smem, size = 0x4, offset = 0x4, fixed_abs, tag = 'smem constant byte address 0x4 - core index']
  #allocation1 [shape = 'u32[144,128]{1,0:T(1,128)}', space=vmem, size = 0x12000, scoped, tag = 'internal scratch']
  %s0 = inlined_call_operand.hbm [shape: f32[1,2048], index: 0, kind: input, shape index: {}]
  %s1 = inlined_call_operand.hbm [shape: f32[1,2048], index: 1, kind: output, shape index: {}]
  %s2 = sld [smem:[#allocation0]]
  $region18: #{tpu_custom_call.1} parent=0
    _
  %s4 = ssub.s32 1, %s2
  %s5 = scalar_select 0, %s4, %s2
  $region1: #{tpu_custom_call.1} parent=0
    #allocation2 [shape = 'u8[8192]{0}', space=vmem, size = 0x2000, scoped, tag = 'input window, operand 0, single buffered']
    #allocation3 [shape = 's32[1]{0}', space=sflag, size = 0x4, scoped, tag = 'scoped memory for tpu_custom_call.1']
    #allocation4 [shape = 's32[1]{0}', space=sflag, size = 0x4, scoped, tag = 'scoped memory for tpu_custom_call.1']
    #allocation5 [shape = 'u8[8192]{0}', space=vmem, size = 0x2000, scoped, tag = 'output window, operand 0, single buffered']
    %6 = vsyncpa [#allocation3], 0
    %7 = vsyncpa [#allocation4], 0
    // Predicated region
    $region2: #{tpu_custom_call.1} parent=1 // pred_check
      _
    $region3: #{tpu_custom_call.1} parent=1 // pred_check_branch
      %9 = sbr.rel (0) target = $region5
    $region4: #{tpu_custom_call.1} parent=1 // pred_region
      %s11 = ssub.s32 256, 256
      %12 = vsyncadd [#allocation3], %s11
      %s14 = sshll.u32 [#allocation2], 4
      %s15 = int_to_ptr.vmem [resolvable:$true] %s14
      %17 = dma.hbm_to_vmem [thread:$0]  %s0, 256, %s15, [#allocation3]
    $region5: #{tpu_custom_call.1} parent=1 // pred_fallthru
      _
    // Predicated region
    $region6: #{tpu_custom_call.1} parent=1 // pred_check
      _
    $region7: #{tpu_custom_call.1} parent=1 // pred_check_branch
      %19 = sbr.rel (0) target = $region9
    $region8: #{tpu_custom_call.1} parent=1 // pred_region
      %20 = dma.done [#allocation3], 256
    $region9: #{tpu_custom_call.1} parent=1 // pred_fallthru
      _
    %v21 = vld [vmem:[#allocation2] sm:$0xff]
    %v22 = vld [vmem:[#allocation2 + $0x8] sm:$0xff]
    %v23 = vmax.f32 %v21, 0.0
    %v24 = vmax.f32 %v22, 0.0
    %v25 = vmul.f32 %v23, 0.5
    %v26 = vmul.f32 %v24, 0.5
    %v27 = vmul.f32 %v25, %v23
    %v28 = vmul.f32 %v26, %v24
    %29 = vst [vmem:[#allocation5] sm:$0xff] %v27
    %30 = vst [vmem:[#allocation5 + $0x8] sm:$0xff] %v28
    // Predicated region
    $region10: #{tpu_custom_call.1} parent=1 // pred_check
      _
    $region11: #{tpu_custom_call.1} parent=1 // pred_check_branch
      %32 = sbr.rel (0) target = $region13
    $region12: #{tpu_custom_call.1} parent=1 // pred_region
      %s34 = ssub.s32 256, 256
      %35 = vsyncadd [#allocation4], %s34
      %s37 = sshll.u32 [#allocation5], 4
      %s38 = int_to_ptr.vmem [resolvable:$true] %s37
      %40 = dma.vmem_to_hbm [thread:$0]  %s38, 256, %s1, [#allocation4]
    $region13: #{tpu_custom_call.1} parent=1 // pred_fallthru
      _
    // Predicated region
    $region14: #{tpu_custom_call.1} parent=1 // pred_check
      _
    $region15: #{tpu_custom_call.1} parent=1 // pred_check_branch
      %42 = sbr.rel (0) target = $region17
    $region16: #{tpu_custom_call.1} parent=1 // pred_region
      %43 = dma.done [#allocation4], 256
    $region17: #{tpu_custom_call.1} parent=1 // pred_fallthru
      _
    %44 = vsyncpa [#allocation3], 1
    %45 = vsyncpa [#allocation4], 1

</llo_original>
